<compile_context>
chip_gen: v5e
topology: v5e:2x2
jax: 0.10.0
libtpu: 0.0.40
codegen_flags: <defaults>
</compile_context>

<pallas_src>
import jax
import jax.numpy as jnp
from jax.experimental import pallas as pl
from jax.experimental.pallas import tpu as pltpu

E = 8            # self.e : max number of entities
D = 32           # self.d : object-centric vector dimension
N_RAW = E * 6    # raw YOLO-style detections: (x, y, w, h, conf, cls) per entity
N_PAD = 128      # raw detection width padded to one full lane width
N_OUT = E * D    # fused, lane-dense output width (256)


def _round_up(x, m):
    return ((x + m - 1) // m) * m


# ---------------------------------------------------------------------------
# Fused Pallas kernel: K-tiled detection head + pad_result/preprocess epilogue
# ---------------------------------------------------------------------------
def fused_perception_kernel(x_ref, w1_ref, b1_ref, w2_ref, b2_ref, sel_ref,
                            o_ref, acc_ref):
    k = pl.program_id(1)

    @pl.when(k == 0)
    def _init():
        acc_ref[...] = jnp.zeros_like(acc_ref)

    # TODO(synk): the real forward runs a YOLO backbone loaded via attempt_load();
    # substituted by a deterministic linear detection head (no checkpoint here).
    acc_ref[...] += jnp.dot(x_ref[...], w1_ref[...],
                            preferred_element_type=jnp.float32)

    @pl.when(k == pl.num_programs(1) - 1)
    def _epilogue():
        det = acc_ref[...] + b1_ref[...]                     # (tm, 128) raw logits, f32
        # Spread each entity's confidence *logit* over its D output columns with
        # a tiny 128x256 selection matmul (MXU; no cross-lane shuffles needed).
        conf = jnp.dot(det, sel_ref[...], preferred_element_type=jnp.float32)
        # preprocess: per-entity 6 -> D projection as one block-diagonal
        # 128x256 matmul (K=48 effective, N=256, lane-dense output).
        obj = jnp.dot(jax.nn.sigmoid(det), w2_ref[...],
                      preferred_element_type=jnp.float32) + b2_ref[...]
        # TODO(synk): true non_max_suppression (IoU suppression, dynamic object
        # count) has no static-shape Pallas equivalent; a confidence gate
        # reproduces pad_result's "missing entities are zero rows" semantics.
        # raw logit > 0  <=>  sigmoid(conf) > 0.5 ; rejected entities -> exact 0.
        o_ref[...] = jnp.where(conf > 0.0, obj, 0.0)


# ---------------------------------------------------------------------------
# Params (synthetic, deterministic — stand-in for YOLO weights + preprocess)
# ---------------------------------------------------------------------------
def init_params(key, feat_dim):
    k1, k2 = jax.random.split(key)
    w1 = jax.random.normal(k1, (feat_dim, N_RAW), jnp.float32) * 0.05
    b1 = jnp.zeros((1, N_RAW), jnp.float32)
    w2 = jax.random.normal(k2, (6, D), jnp.float32) * 0.5
    b2 = jnp.zeros((1, D), jnp.float32)
    return {"w1": w1, "b1": b1, "w2": w2, "b2": b2}


# ---------------------------------------------------------------------------
# Wrapper: flatten NCHW, pad to tile boundaries, one fused pallas_call
# ---------------------------------------------------------------------------
@jax.jit
def fcnn_perception_forward(imgs, params):
    B, C, H, W = imgs.shape
    F = C * H * W

    # --- static tiling decisions (shapes are static under jit) --------------
    TM = min(256, _round_up(max(B, 1), 16))    # bf16 sublane-aligned, <=256 (MXU)
    F_aligned = _round_up(F, 128)
    TK = min(2048, F_aligned)                  # bf16 x-tile <=1 MiB: fits v7x 64 MiB VMEM
    F_pad = _round_up(F_aligned, TK)
    M_pad = _round_up(B, TM)

    # --- XLA-side packing: flatten NCHW, pad, cast to bf16 for the MXU -------
    x = imgs.reshape(B, F).astype(jnp.float32)
    x = jnp.pad(x, ((0, M_pad - B), (0, F_pad - F))).astype(jnp.bfloat16)

    w1 = jnp.pad(params["w1"].astype(jnp.float32),
                 ((0, F_pad - F), (0, N_PAD - N_RAW))).astype(jnp.bfloat16)
    b1 = jnp.pad(params["b1"].astype(jnp.float32), ((0, 0), (0, N_PAD - N_RAW)))

    # Block-diagonal projection: entity e's 6 raw columns -> its D output cols.
    w2 = params["w2"].astype(jnp.float32)                      # (6, D)
    eye_e = jnp.eye(E, dtype=jnp.float32)
    w2_bd = jnp.pad(jnp.kron(eye_e, w2), ((0, N_PAD - N_RAW), (0, 0)))   # (128, 256)
    conf_pick = jnp.zeros((6, D), jnp.float32).at[4].set(1.0)            # conf column
    sel = jnp.pad(jnp.kron(eye_e, conf_pick), ((0, N_PAD - N_RAW), (0, 0)))
    b2_t = jnp.tile(params["b2"].astype(jnp.float32).reshape(1, D), (1, E))

    grid = (M_pad // TM, F_pad // TK)

    out = pl.pallas_call(
        fused_perception_kernel,
        out_shape=jax.ShapeDtypeStruct((M_pad, N_OUT), jnp.float32),
        grid_spec=pltpu.PrefetchScalarGridSpec(
            num_scalar_prefetch=0,
            grid=grid,
            in_specs=[
                pl.BlockSpec((TM, TK), lambda i, k: (i, k)),          # x tile
                pl.BlockSpec((TK, N_PAD), lambda i, k: (k, 0)),       # w1 tile
                pl.BlockSpec((1, N_PAD), lambda i, k: (0, 0)),        # b1
                pl.BlockSpec((N_PAD, N_OUT), lambda i, k: (0, 0)),    # w2 block-diag
                pl.BlockSpec((1, N_OUT), lambda i, k: (0, 0)),        # b2 tiled
                pl.BlockSpec((N_PAD, N_OUT), lambda i, k: (0, 0)),    # conf selector
            ],
            out_specs=pl.BlockSpec((TM, N_OUT), lambda i, k: (i, 0)),
            scratch_shapes=[pltpu.VMEM((TM, N_PAD), jnp.float32)],
        ),
        compiler_params=pltpu.CompilerParams(
            dimension_semantics=("parallel", "arbitrary"),
            vmem_limit_bytes=32 * 1024 * 1024,
        ),
    )(x, w1, b1, w2_bd, b2_t, sel)

    return out[:B].reshape(B, E, D)                             # (batch, e, d)


if __name__ == "__main__":
    key = jax.random.PRNGKey(0)
    k_img, k_par = jax.random.split(key)

    imgs = jax.random.normal(k_img, (2, 4, 16, 16), jnp.float32)  # NCHW
    params = init_params(k_par, 4 * 16 * 16)

    out = fcnn_perception_forward(imgs, params)
    out = jax.block_until_ready(out)

    assert out.shape == (2, E, D), out.shape
    assert out.dtype == jnp.float32
    assert bool(jnp.all(jnp.isfinite(out)))
    print("KERNEL_OK")
</pallas_src>

<mosaic_0001>
module attributes {stable_mosaic.version = 11 : i64} {
  func.func @fused_perception_kernel(%arg0: i32, %arg1: i32, %arg2: memref<16x1024xbf16, #tpu.memory_space<vmem>>, %arg3: memref<1024x128xbf16, #tpu.memory_space<vmem>>, %arg4: memref<1x128xf32, #tpu.memory_space<vmem>>, %arg5: memref<128x256xf32, #tpu.memory_space<vmem>>, %arg6: memref<1x256xf32, #tpu.memory_space<vmem>>, %arg7: memref<128x256xf32, #tpu.memory_space<vmem>>, %arg8: memref<16x256xf32, #tpu.memory_space<vmem>>, %arg9: memref<16x128xf32, #tpu.memory_space<vmem>>) attributes {dimension_semantics = [#tpu.dimension_semantics<parallel>, #tpu.dimension_semantics<arbitrary>], iteration_bounds = array<i64: 1, 1>, scalar_prefetch = 0 : i64, scratch_operands = 1 : i64, tpu.core_type = #tpu.core_type<tc>, window_params = [{transform_indices = @transform_0, window_bounds = array<i64: 16, 1024>}, {transform_indices = @transform_1, window_bounds = array<i64: 1024, 128>}, {pipeline_mode = #tpu.pipeline_mode<synchronous>, transform_indices = @transform_2, window_bounds = array<i64: 1, 128>}, {pipeline_mode = #tpu.pipeline_mode<synchronous>, transform_indices = @transform_3, window_bounds = array<i64: 128, 256>}, {pipeline_mode = #tpu.pipeline_mode<synchronous>, transform_indices = @transform_4, window_bounds = array<i64: 1, 256>}, {pipeline_mode = #tpu.pipeline_mode<synchronous>, transform_indices = @transform_5, window_bounds = array<i64: 128, 256>}, {transform_indices = @transform_6, window_bounds = array<i64: 16, 256>}]} {
    %c0_i32 = arith.constant 0 : i32
    %0 = arith.cmpi eq, %arg1, %c0_i32 : i32
    %1 = arith.extui %0 : i1 to i32
    %c0_i32_0 = arith.constant 0 : i32
    %2 = arith.cmpi ne, %1, %c0_i32_0 : i32
    scf.if %2 {
      %cst_10 = arith.constant 0.000000e+00 : f32
      %12 = vector.broadcast %cst_10 : f32 to vector<16x128xf32>
      %c0_11 = arith.constant 0 : index
      %c0_12 = arith.constant 0 : index
      %13 = vector.load %arg9[%c0_11, %c0_12] : memref<16x128xf32, #tpu.memory_space<vmem>>, vector<16x128xf32>
      tpu.vector_store %arg9[%c0_11, %c0_12], %12 {strides = array<i32>} : memref<16x128xf32, #tpu.memory_space<vmem>>, vector<16x128xf32>,
    } else {
    }
    %c0 = arith.constant 0 : index
    %c0_1 = arith.constant 0 : index
    %3 = vector.load %arg9[%c0, %c0_1] : memref<16x128xf32, #tpu.memory_space<vmem>>, vector<16x128xf32>
    %c0_2 = arith.constant 0 : index
    %c0_3 = arith.constant 0 : index
    %4 = vector.load %arg2[%c0_2, %c0_3] : memref<16x1024xbf16, #tpu.memory_space<vmem>>, vector<16x1024xbf16>
    %c0_4 = arith.constant 0 : index
    %c0_5 = arith.constant 0 : index
    %5 = vector.load %arg3[%c0_4, %c0_5] : memref<1024x128xbf16, #tpu.memory_space<vmem>>, vector<1024x128xbf16>
    %cst = arith.constant dense<0.000000e+00> : vector<16x128xf32>
    %6 = tpu.matmul %4, %5, %cst {dimension_numbers = #tpu.dot_dimension_numbers<[1], [0], [0], [1], [0, 0, 1, 1], [], []>} : vector<16x1024xbf16>, vector<1024x128xbf16>, vector<16x128xf32> -> vector<16x128xf32>
    %7 = arith.addf %3, %6 : vector<16x128xf32>
    %c0_6 = arith.constant 0 : index
    %c0_7 = arith.constant 0 : index
    %8 = vector.load %arg9[%c0_6, %c0_7] : memref<16x128xf32, #tpu.memory_space<vmem>>, vector<16x128xf32>
    tpu.vector_store %arg9[%c0_6, %c0_7], %7 {strides = array<i32>} : memref<16x128xf32, #tpu.memory_space<vmem>>, vector<16x128xf32>,
    %c0_i32_8 = arith.constant 0 : i32
    %9 = arith.cmpi eq, %arg1, %c0_i32_8 : i32
    %10 = arith.extui %9 : i1 to i32
    %c0_i32_9 = arith.constant 0 : i32
    %11 = arith.cmpi ne, %10, %c0_i32_9 : i32
    scf.if %11 {
      %c0_10 = arith.constant 0 : index
      %c0_11 = arith.constant 0 : index
      %12 = vector.load %arg9[%c0_10, %c0_11] : memref<16x128xf32, #tpu.memory_space<vmem>>, vector<16x128xf32>
      %c0_12 = arith.constant 0 : index
      %c0_13 = arith.constant 0 : index
      %13 = vector.load %arg4[%c0_12, %c0_13] : memref<1x128xf32, #tpu.memory_space<vmem>>, vector<1x128xf32>
      %14 = vector.broadcast %13 : vector<1x128xf32> to vector<16x128xf32>
      %15 = arith.addf %12, %14 : vector<16x128xf32>
      %c0_14 = arith.constant 0 : index
      %c0_15 = arith.constant 0 : index
      %16 = vector.load %arg7[%c0_14, %c0_15] : memref<128x256xf32, #tpu.memory_space<vmem>>, vector<128x256xf32>
      %cst_16 = arith.constant dense<0.000000e+00> : vector<16x256xf32>
      %17 = tpu.matmul %15, %16, %cst_16 {dimension_numbers = #tpu.dot_dimension_numbers<[1], [0], [0], [1], [0, 0, 1, 1], [], []>} : vector<16x128xf32>, vector<128x256xf32>, vector<16x256xf32> -> vector<16x256xf32>
      %18 = arith.negf %15 : vector<16x128xf32>
      %19 = math.exp %18 : vector<16x128xf32>
      %cst_17 = arith.constant 1.000000e+00 : f32
      %20 = vector.broadcast %cst_17 : f32 to vector<16x128xf32>
      %21 = arith.addf %20, %19 : vector<16x128xf32>
      %22 = arith.divf %20, %21 : vector<16x128xf32>
      %c0_18 = arith.constant 0 : index
      %c0_19 = arith.constant 0 : index
      %23 = vector.load %arg5[%c0_18, %c0_19] : memref<128x256xf32, #tpu.memory_space<vmem>>, vector<128x256xf32>
      %cst_20 = arith.constant dense<0.000000e+00> : vector<16x256xf32>
      %24 = tpu.matmul %22, %23, %cst_20 {dimension_numbers = #tpu.dot_dimension_numbers<[1], [0], [0], [1], [0, 0, 1, 1], [], []>} : vector<16x128xf32>, vector<128x256xf32>, vector<16x256xf32> -> vector<16x256xf32>
      %c0_21 = arith.constant 0 : index
      %c0_22 = arith.constant 0 : index
      %25 = vector.load %arg6[%c0_21, %c0_22] : memref<1x256xf32, #tpu.memory_space<vmem>>, vector<1x256xf32>
      %26 = vector.broadcast %25 : vector<1x256xf32> to vector<16x256xf32>
      %27 = arith.addf %24, %26 : vector<16x256xf32>
      %cst_23 = arith.constant 0.000000e+00 : f32
      %28 = vector.broadcast %cst_23 : f32 to vector<16x256xf32>
      %29 = arith.cmpf ogt, %17, %28 : vector<16x256xf32>
      %cst_24 = arith.constant 0.000000e+00 : f32
      %30 = vector.broadcast %cst_24 : f32 to vector<16x256xf32>
      %31 = arith.select %29, %27, %30 : vector<16x256xi1>, vector<16x256xf32>
      %c0_25 = arith.constant 0 : index
      %c0_26 = arith.constant 0 : index
      %32 = vector.load %arg8[%c0_25, %c0_26] : memref<16x256xf32, #tpu.memory_space<vmem>>, vector<16x256xf32>
      tpu.vector_store %arg8[%c0_25, %c0_26], %31 {strides = array<i32>} : memref<16x256xf32, #tpu.memory_space<vmem>>, vector<16x256xf32>,
    } else {
    }
    return
  }
  func.func @transform_0(%arg0: i32, %arg1: i32) -> (i32, i32) {
    %c0_i32 = arith.constant 0 : i32
    return %arg0, %arg1 : i32, i32
  }
  func.func @transform_1(%arg0: i32, %arg1: i32) -> (i32, i32) {
    %c0_i32 = arith.constant 0 : i32
    %c0_i32_0 = arith.constant 0 : i32
    return %arg1, %c0_i32 : i32, i32
  }
  func.func @transform_2(%arg0: i32, %arg1: i32) -> (i32, i32) {
    %c0_i32 = arith.constant 0 : i32
    %c0_i32_0 = arith.constant 0 : i32
    %c0_i32_1 = arith.constant 0 : i32
    return %c0_i32, %c0_i32_0 : i32, i32
  }
  func.func @transform_3(%arg0: i32, %arg1: i32) -> (i32, i32) {
    %c0_i32 = arith.constant 0 : i32
    %c0_i32_0 = arith.constant 0 : i32
    %c0_i32_1 = arith.constant 0 : i32
    return %c0_i32, %c0_i32_0 : i32, i32
  }
  func.func @transform_4(%arg0: i32, %arg1: i32) -> (i32, i32) {
    %c0_i32 = arith.constant 0 : i32
    %c0_i32_0 = arith.constant 0 : i32
    %c0_i32_1 = arith.constant 0 : i32
    return %c0_i32, %c0_i32_0 : i32, i32
  }
  func.func @transform_5(%arg0: i32, %arg1: i32) -> (i32, i32) {
    %c0_i32 = arith.constant 0 : i32
    %c0_i32_0 = arith.constant 0 : i32
    %c0_i32_1 = arith.constant 0 : i32
    return %c0_i32, %c0_i32_0 : i32, i32
  }
  func.func @transform_6(%arg0: i32, %arg1: i32) -> (i32, i32) {
    %c0_i32 = arith.constant 0 : i32
    %c0_i32_0 = arith.constant 0 : i32
    return %arg0, %c0_i32 : i32, i32
  }
}

</mosaic_0001>

<llo_original>
// kernel: fcnn_perception_forward.1
$region0: #{fcnn_perception_forward.1}
  #allocation0 [shape = 'u32[]', space=smem, size = 0x4, offset = 0x4, fixed_abs, tag = 'smem constant byte address 0x4 - core index']
  #allocation1 [shape = 'u32[72,128]{1,0:T(1,128)}', space=vmem, size = 0x9000, scoped, tag = 'internal scratch']
  #allocation2 [shape = 'f32[16,128]{1,0:T(8,128)}', space=vmem, size = 0x2000, scoped, tag = 'scratch operand']
  %s0 = inlined_call_operand.vmem [shape: bf16[16,1024], index: 0, kind: input, shape index: {}]
  %s1 = inlined_call_operand.vmem [shape: bf16[1024,128], index: 1, kind: input, shape index: {}]
  %s2 = inlined_call_operand.vmem [shape: f32[1,128], index: 2, kind: input, shape index: {}]
  %s3 = inlined_call_operand.vmem [shape: f32[128,256], index: 3, kind: input, shape index: {}]
  %s4 = inlined_call_operand.vmem [shape: f32[1,256], index: 4, kind: input, shape index: {}]
  %s5 = inlined_call_operand.vmem [shape: f32[128,256], index: 5, kind: input, shape index: {}]
  %s6 = inlined_call_operand.vmem [shape: f32[16,256], index: 6, kind: output, shape index: {}]
  %s7 = sld [smem:[#allocation0]]
  $region42: #{fcnn_perception_forward.1} parent=0
    _
  %s9 = ssub.s32 1, %s7
  %s10 = scalar_select 0, %s9, %s7
  // Predicated region
  $region2: #{fcnn_perception_forward.1} parent=0 // pred_check
    _
  $region3: #{fcnn_perception_forward.1} parent=0 // pred_check_branch
    %12 = sbr.rel (0) target = $region5
  $region4: #{fcnn_perception_forward.1} parent=0 // pred_region
    _
  $region5: #{fcnn_perception_forward.1} parent=0 // pred_fallthru
    _
  // Predicated region
  $region6: #{fcnn_perception_forward.1} parent=0 // pred_check
    _
  $region7: #{fcnn_perception_forward.1} parent=0 // pred_check_branch
    %14 = sbr.rel (0) target = $region9
  $region8: #{fcnn_perception_forward.1} parent=0 // pred_region
    _
  $region9: #{fcnn_perception_forward.1} parent=0 // pred_fallthru
    _
  // Predicated region
  $region10: #{fcnn_perception_forward.1} parent=0 // pred_check
    _
  $region11: #{fcnn_perception_forward.1} parent=0 // pred_check_branch
    %16 = sbr.rel (0) target = $region13
  $region12: #{fcnn_perception_forward.1} parent=0 // pred_region
    _
  $region13: #{fcnn_perception_forward.1} parent=0 // pred_fallthru
    _
  // Predicated region
  $region14: #{fcnn_perception_forward.1} parent=0 // pred_check
    _
  $region15: #{fcnn_perception_forward.1} parent=0 // pred_check_branch
    %18 = sbr.rel (0) target = $region17
  $region16: #{fcnn_perception_forward.1} parent=0 // pred_region
    _
  $region17: #{fcnn_perception_forward.1} parent=0 // pred_fallthru
    _
  // Predicated region
  $region18: #{fcnn_perception_forward.1} parent=0 // pred_check
    _
  $region19: #{fcnn_perception_forward.1} parent=0 // pred_check_branch
    %20 = sbr.rel (0) target = $region21
  $region20: #{fcnn_perception_forward.1} parent=0 // pred_region
    _
  $region21: #{fcnn_perception_forward.1} parent=0 // pred_fallthru
    _
  // Predicated region
  $region22: #{fcnn_perception_forward.1} parent=0 // pred_check
    _
  $region23: #{fcnn_perception_forward.1} parent=0 // pred_check_branch
    %22 = sbr.rel (0) target = $region25
  $region24: #{fcnn_perception_forward.1} parent=0 // pred_region
    _
  $region25: #{fcnn_perception_forward.1} parent=0 // pred_fallthru
    _
  %p23 = scmp.eq.s32.totalorder 0, 0
  // Predicated region
  $region26: #{fcnn_perception_forward.1} parent=0 // pred_check
    %p24 = pneg %p23
  $region27: #{fcnn_perception_forward.1} parent=0 // pred_check_branch
    %26 = sbr.rel (%p24) target = $region29
  $region28: #{fcnn_perception_forward.1} parent=0 // pred_region
    %27 = vst [vmem:[#allocation2] sm:$0xff] 0.0
    %28 = vst [vmem:[#allocation2 + $0x8] sm:$0xff] 0.0
  $region29: #{fcnn_perception_forward.1} parent=0 // pred_fallthru
    _
  %v29 = vld [vmem:[#allocation2] sm:$0xff]
  %v30 = vld [vmem:[#allocation2 + $0x8] sm:$0xff]
  %v31 = vld [vmem:[%s0] sm:$0xff]
  %v32 = vld [vmem:[%s0 + $0x8] sm:$0xff]
  %v33 = vld [vmem:[%s0 + $0x10] sm:$0xff]
  %v34 = vld [vmem:[%s0 + $0x18] sm:$0xff]
  %v35 = vld [vmem:[%s0 + $0x20] sm:$0xff]
  %v36 = vld [vmem:[%s0 + $0x28] sm:$0xff]
  %v37 = vld [vmem:[%s0 + $0x30] sm:$0xff]
  %v38 = vld [vmem:[%s0 + $0x38] sm:$0xff]
  %v39 = vld [vmem:[%s1] sm:$0xf]
  %v40 = vld [vmem:[%s1 + $0x4] sm:$0xf]
  %v41 = vld [vmem:[%s1 + $0x8] sm:$0xf]
  %v42 = vld [vmem:[%s1 + $0xc] sm:$0xf]
  %v43 = vld [vmem:[%s1 + $0x10] sm:$0xf]
  %v44 = vld [vmem:[%s1 + $0x14] sm:$0xf]
  %v45 = vld [vmem:[%s1 + $0x18] sm:$0xf]
  %v46 = vld [vmem:[%s1 + $0x1c] sm:$0xf]
  %v47 = vld [vmem:[%s1 + $0x20] sm:$0xf]
  %v48 = vld [vmem:[%s1 + $0x24] sm:$0xf]
  %v49 = vld [vmem:[%s1 + $0x28] sm:$0xf]
  %v50 = vld [vmem:[%s1 + $0x2c] sm:$0xf]
  %v51 = vld [vmem:[%s1 + $0x30] sm:$0xf]
  %v52 = vld [vmem:[%s1 + $0x34] sm:$0xf]
  %v53 = vld [vmem:[%s1 + $0x38] sm:$0xf]
  %v54 = vld [vmem:[%s1 + $0x3c] sm:$0xf]
  %v55 = vld [vmem:[%s1 + $0x40] sm:$0xf]
  %v56 = vld [vmem:[%s1 + $0x44] sm:$0xf]
  %v57 = vld [vmem:[%s1 + $0x48] sm:$0xf]
  %v58 = vld [vmem:[%s1 + $0x4c] sm:$0xf]
  %v59 = vld [vmem:[%s1 + $0x50] sm:$0xf]
  %v60 = vld [vmem:[%s1 + $0x54] sm:$0xf]
  %v61 = vld [vmem:[%s1 + $0x58] sm:$0xf]
  %v62 = vld [vmem:[%s1 + $0x5c] sm:$0xf]
  %v63 = vld [vmem:[%s1 + $0x60] sm:$0xf]
  %v64 = vld [vmem:[%s1 + $0x64] sm:$0xf]
  %v65 = vld [vmem:[%s1 + $0x68] sm:$0xf]
  %v66 = vld [vmem:[%s1 + $0x6c] sm:$0xf]
  %v67 = vld [vmem:[%s1 + $0x70] sm:$0xf]
  %v68 = vld [vmem:[%s1 + $0x74] sm:$0xf]
  %v69 = vld [vmem:[%s1 + $0x78] sm:$0xf]
  %v70 = vld [vmem:[%s1 + $0x7c] sm:$0xf]
  %v71 = vld [vmem:[%s1 + $0x80] sm:$0xf]
  %v72 = vld [vmem:[%s1 + $0x84] sm:$0xf]
  %v73 = vld [vmem:[%s1 + $0x88] sm:$0xf]
  %v74 = vld [vmem:[%s1 + $0x8c] sm:$0xf]
  %v75 = vld [vmem:[%s1 + $0x90] sm:$0xf]
  %v76 = vld [vmem:[%s1 + $0x94] sm:$0xf]
  %v77 = vld [vmem:[%s1 + $0x98] sm:$0xf]
  %v78 = vld [vmem:[%s1 + $0x9c] sm:$0xf]
  %v79 = vld [vmem:[%s1 + $0xa0] sm:$0xf]
  %v80 = vld [vmem:[%s1 + $0xa4] sm:$0xf]
  %v81 = vld [vmem:[%s1 + $0xa8] sm:$0xf]
  %v82 = vld [vmem:[%s1 + $0xac] sm:$0xf]
  %v83 = vld [vmem:[%s1 + $0xb0] sm:$0xf]
  %v84 = vld [vmem:[%s1 + $0xb4] sm:$0xf]
  %v85 = vld [vmem:[%s1 + $0xb8] sm:$0xf]
  %v86 = vld [vmem:[%s1 + $0xbc] sm:$0xf]
  %v87 = vld [vmem:[%s1 + $0xc0] sm:$0xf]
  %v88 = vld [vmem:[%s1 + $0xc4] sm:$0xf]
  %v89 = vld [vmem:[%s1 + $0xc8] sm:$0xf]
  %v90 = vld [vmem:[%s1 + $0xcc] sm:$0xf]
  %v91 = vld [vmem:[%s1 + $0xd0] sm:$0xf]
  %v92 = vld [vmem:[%s1 + $0xd4] sm:$0xf]
  %v93 = vld [vmem:[%s1 + $0xd8] sm:$0xf]
  %v94 = vld [vmem:[%s1 + $0xdc] sm:$0xf]
  %v95 = vld [vmem:[%s1 + $0xe0] sm:$0xf]
  %v96 = vld [vmem:[%s1 + $0xe4] sm:$0xf]
  %v97 = vld [vmem:[%s1 + $0xe8] sm:$0xf]
  %v98 = vld [vmem:[%s1 + $0xec] sm:$0xf]
  %v99 = vld [vmem:[%s1 + $0xf0] sm:$0xf]
  %v100 = vld [vmem:[%s1 + $0xf4] sm:$0xf]
  %v101 = vld [vmem:[%s1 + $0xf8] sm:$0xf]
  %v102 = vld [vmem:[%s1 + $0xfc] sm:$0xf]
  %v103 = vld [vmem:[%s1 + $0x100] sm:$0xf]
  %v104 = vld [vmem:[%s1 + $0x104] sm:$0xf]
  %v105 = vld [vmem:[%s1 + $0x108] sm:$0xf]
  %v106 = vld [vmem:[%s1 + $0x10c] sm:$0xf]
  %v107 = vld [vmem:[%s1 + $0x110] sm:$0xf]
  %v108 = vld [vmem:[%s1 + $0x114] sm:$0xf]
  %v109 = vld [vmem:[%s1 + $0x118] sm:$0xf]
  %v110 = vld [vmem:[%s1 + $0x11c] sm:$0xf]
  %v111 = vld [vmem:[%s1 + $0x120] sm:$0xf]
  %v112 = vld [vmem:[%s1 + $0x124] sm:$0xf]
  %v113 = vld [vmem:[%s1 + $0x128] sm:$0xf]
  %v114 = vld [vmem:[%s1 + $0x12c] sm:$0xf]
  %v115 = vld [vmem:[%s1 + $0x130] sm:$0xf]
  %v116 = vld [vmem:[%s1 + $0x134] sm:$0xf]
  %v117 = vld [vmem:[%s1 + $0x138] sm:$0xf]
  %v118 = vld [vmem:[%s1 + $0x13c] sm:$0xf]
  %v119 = vld [vmem:[%s1 + $0x140] sm:$0xf]
  %v120 = vld [vmem:[%s1 + $0x144] sm:$0xf]
  %v121 = vld [vmem:[%s1 + $0x148] sm:$0xf]
  %v122 = vld [vmem:[%s1 + $0x14c] sm:$0xf]
  %v123 = vld [vmem:[%s1 + $0x150] sm:$0xf]
  %v124 = vld [vmem:[%s1 + $0x154] sm:$0xf]
  %v125 = vld [vmem:[%s1 + $0x158] sm:$0xf]
  %v126 = vld [vmem:[%s1 + $0x15c] sm:$0xf]
  %v127 = vld [vmem:[%s1 + $0x160] sm:$0xf]
  %v128 = vld [vmem:[%s1 + $0x164] sm:$0xf]
  %v129 = vld [vmem:[%s1 + $0x168] sm:$0xf]
  %v130 = vld [vmem:[%s1 + $0x16c] sm:$0xf]
  %v131 = vld [vmem:[%s1 + $0x170] sm:$0xf]
  %v132 = vld [vmem:[%s1 + $0x174] sm:$0xf]
  %v133 = vld [vmem:[%s1 + $0x178] sm:$0xf]
  %v134 = vld [vmem:[%s1 + $0x17c] sm:$0xf]
  %v135 = vld [vmem:[%s1 + $0x180] sm:$0xf]
  %v136 = vld [vmem:[%s1 + $0x184] sm:$0xf]
  %v137 = vld [vmem:[%s1 + $0x188] sm:$0xf]
  %v138 = vld [vmem:[%s1 + $0x18c] sm:$0xf]
  %v139 = vld [vmem:[%s1 + $0x190] sm:$0xf]
  %v140 = vld [vmem:[%s1 + $0x194] sm:$0xf]
  %v141 = vld [vmem:[%s1 + $0x198] sm:$0xf]
  %v142 = vld [vmem:[%s1 + $0x19c] sm:$0xf]
  %v143 = vld [vmem:[%s1 + $0x1a0] sm:$0xf]
  %v144 = vld [vmem:[%s1 + $0x1a4] sm:$0xf]
  %v145 = vld [vmem:[%s1 + $0x1a8] sm:$0xf]
  %v146 = vld [vmem:[%s1 + $0x1ac] sm:$0xf]
  %v147 = vld [vmem:[%s1 + $0x1b0] sm:$0xf]
  %v148 = vld [vmem:[%s1 + $0x1b4] sm:$0xf]
  %v149 = vld [vmem:[%s1 + $0x1b8] sm:$0xf]
  %v150 = vld [vmem:[%s1 + $0x1bc] sm:$0xf]
  %v151 = vld [vmem:[%s1 + $0x1c0] sm:$0xf]
  %v152 = vld [vmem:[%s1 + $0x1c4] sm:$0xf]
  %v153 = vld [vmem:[%s1 + $0x1c8] sm:$0xf]
  %v154 = vld [vmem:[%s1 + $0x1cc] sm:$0xf]
  %v155 = vld [vmem:[%s1 + $0x1d0] sm:$0xf]
  %v156 = vld [vmem:[%s1 + $0x1d4] sm:$0xf]
  %v157 = vld [vmem:[%s1 + $0x1d8] sm:$0xf]
  %v158 = vld [vmem:[%s1 + $0x1dc] sm:$0xf]
  %v159 = vld [vmem:[%s1 + $0x1e0] sm:$0xf]
  %v160 = vld [vmem:[%s1 + $0x1e4] sm:$0xf]
  %v161 = vld [vmem:[%s1 + $0x1e8] sm:$0xf]
  %v162 = vld [vmem:[%s1 + $0x1ec] sm:$0xf]
  %v163 = vld [vmem:[%s1 + $0x1f0] sm:$0xf]
  %v164 = vld [vmem:[%s1 + $0x1f4] sm:$0xf]
  %v165 = vld [vmem:[%s1 + $0x1f8] sm:$0xf]
  %v166 = vld [vmem:[%s1 + $0x1fc] sm:$0xf]
  %v175 = vunpack.c.l.b16 %v31
  %v176 = vunpack.c.h.b16 %v31
  %v177 = vunpack.c.l.b16 %v32
  %v178 = vunpack.c.h.b16 %v32
  %v179 = vunpack.c.l.b16 %v33
  %v180 = vunpack.c.h.b16 %v33
  %v181 = vunpack.c.l.b16 %v34
  %v182 = vunpack.c.h.b16 %v34
  %v183 = vunpack.c.l.b16 %v35
  %v184 = vunpack.c.h.b16 %v35
  %v185 = vunpack.c.l.b16 %v36
  %v186 = vunpack.c.h.b16 %v36
  %v187 = vunpack.c.l.b16 %v37
  %v188 = vunpack.c.h.b16 %v37
  %v189 = vunpack.c.l.b16 %v38
  %v190 = vunpack.c.h.b16 %v38
  %v191 = vpack.c.b16 %v183, %v175
  %v192 = vpack.c.b16 %v184, %v176
  %v193 = vpack.c.b16 %v185, %v177
  %v194 = vpack.c.b16 %v186, %v178
  %v195 = vpack.c.b16 %v187, %v179
  %v196 = vpack.c.b16 %v188, %v180
  %v197 = vpack.c.b16 %v189, %v181
  %v198 = vpack.c.b16 %v190, %v182
  %v335 = vunpack.c.l.b16 %v39
  %v336 = vunpack.c.l.b16 %v40
  %v337 = vunpack.c.l.b16 %v41
  %v338 = vunpack.c.l.b16 %v42
  %v339 = vunpack.c.l.b16 %v43
  %v340 = vunpack.c.l.b16 %v44
  %v341 = vunpack.c.l.b16 %v45
  %v342 = vunpack.c.l.b16 %v46
  %v343 = vunpack.c.l.b16 %v47
  %v344 = vunpack.c.l.b16 %v48
  %v345 = vunpack.c.l.b16 %v49
  %v346 = vunpack.c.l.b16 %v50
  %v347 = vunpack.c.l.b16 %v51
  %v348 = vunpack.c.l.b16 %v52
  %v349 = vunpack.c.l.b16 %v53
  %v350 = vunpack.c.l.b16 %v54
  %v351 = vunpack.c.l.b16 %v55
  %v352 = vunpack.c.l.b16 %v56
  %v353 = vunpack.c.l.b16 %v57
  %v354 = vunpack.c.l.b16 %v58
  %v355 = vunpack.c.l.b16 %v59
  %v356 = vunpack.c.l.b16 %v60
  %v357 = vunpack.c.l.b16 %v61
  %v358 = vunpack.c.l.b16 %v62
  %v359 = vunpack.c.l.b16 %v63
  %v360 = vunpack.c.l.b16 %v64
  %v361 = vunpack.c.l.b16 %v65
  %v362 = vunpack.c.l.b16 %v66
  %v363 = vunpack.c.l.b16 %v67
  %v364 = vunpack.c.l.b16 %v68
  %v365 = vunpack.c.l.b16 %v69
  %v366 = vunpack.c.l.b16 %v70
  %v367 = vunpack.c.l.b16 %v71
  %v368 = vunpack.c.l.b16 %v72
  %v369 = vunpack.c.l.b16 %v73
  %v370 = vunpack.c.l.b16 %v74
  %v371 = vunpack.c.l.b16 %v75
  %v372 = vunpack.c.l.b16 %v76
  %v373 = vunpack.c.l.b16 %v77
  %v374 = vunpack.c.l.b16 %v78
  %v375 = vunpack.c.l.b16 %v79
  %v376 = vunpack.c.l.b16 %v80
  %v377 = vunpack.c.l.b16 %v81
  %v378 = vunpack.c.l.b16 %v82
  %v379 = vunpack.c.l.b16 %v83
  %v380 = vunpack.c.l.b16 %v84
  %v381 = vunpack.c.l.b16 %v85
  %v382 = vunpack.c.l.b16 %v86
  %v383 = vunpack.c.l.b16 %v87
  %v384 = vunpack.c.l.b16 %v88
  %v385 = vunpack.c.l.b16 %v89
  %v386 = vunpack.c.l.b16 %v90
  %v387 = vunpack.c.l.b16 %v91
  %v388 = vunpack.c.l.b16 %v92
  %v389 = vunpack.c.l.b16 %v93
  %v390 = vunpack.c.l.b16 %v94
  %v391 = vunpack.c.l.b16 %v95
  %v392 = vunpack.c.l.b16 %v96
  %v393 = vunpack.c.l.b16 %v97
  %v394 = vunpack.c.l.b16 %v98
  %v395 = vunpack.c.l.b16 %v99
  %v396 = vunpack.c.l.b16 %v100
  %v397 = vunpack.c.l.b16 %v101
  %v398 = vunpack.c.l.b16 %v102
  %v399 = vunpack.c.l.b16 %v103
  %v400 = vunpack.c.l.b16 %v104
  %v401 = vunpack.c.l.b16 %v105
  %v402 = vunpack.c.l.b16 %v106
  %v403 = vunpack.c.l.b16 %v107
  %v404 = vunpack.c.l.b16 %v108
  %v405 = vunpack.c.l.b16 %v109
  %v406 = vunpack.c.l.b16 %v110
  %v407 = vunpack.c.l.b16 %v111
  %v408 = vunpack.c.l.b16 %v112
  %v409 = vunpack.c.l.b16 %v113
  %v410 = vunpack.c.l.b16 %v114
  %v411 = vunpack.c.l.b16 %v115
  %v412 = vunpack.c.l.b16 %v116
  %v413 = vunpack.c.l.b16 %v117
  %v414 = vunpack.c.l.b16 %v118
  %v415 = vunpack.c.l.b16 %v119
  %v416 = vunpack.c.l.b16 %v120
  %v417 = vunpack.c.l.b16 %v121
  %v418 = vunpack.c.l.b16 %v122
  %v419 = vunpack.c.l.b16 %v123
  %v420 = vunpack.c.l.b16 %v124
  %v421 = vunpack.c.l.b16 %v125
  %v422 = vunpack.c.l.b16 %v126
  %v423 = vunpack.c.l.b16 %v127
  %v424 = vunpack.c.l.b16 %v128
  %v425 = vunpack.c.l.b16 %v129
  %v426 = vunpack.c.l.b16 %v130
  %v427 = vunpack.c.l.b16 %v131
  %v428 = vunpack.c.l.b16 %v132
  %v429 = vunpack.c.l.b16 %v133
  %v430 = vunpack.c.l.b16 %v134
  %v431 = vunpack.c.l.b16 %v135
  %v432 = vunpack.c.l.b16 %v136
  %v433 = vunpack.c.l.b16 %v137
  %v434 = vunpack.c.l.b16 %v138
  %v435 = vunpack.c.l.b16 %v139
  %v436 = vunpack.c.l.b16 %v140
  %v437 = vunpack.c.l.b16 %v141
  %v438 = vunpack.c.l.b16 %v142
  %v439 = vunpack.c.l.b16 %v143
  %v440 = vunpack.c.l.b16 %v144
  %v441 = vunpack.c.l.b16 %v145
  %v442 = vunpack.c.l.b16 %v146
  %v443 = vunpack.c.l.b16 %v147
  %v444 = vunpack.c.l.b16 %v148
  %v445 = vunpack.c.l.b16 %v149
  %v446 = vunpack.c.l.b16 %v150
  %v447 = vunpack.c.l.b16 %v151
  %v448 = vunpack.c.l.b16 %v152
  %v449 = vunpack.c.l.b16 %v153
  %v450 = vunpack.c.l.b16 %v154
  %v451 = vunpack.c.l.b16 %v155
  %v452 = vunpack.c.l.b16 %v156
  %v453 = vunpack.c.l.b16 %v157
  %v454 = vunpack.c.l.b16 %v158
  %v455 = vunpack.c.l.b16 %v159
  %v456 = vunpack.c.l.b16 %v160
  %v457 = vunpack.c.l.b16 %v161
  %v458 = vunpack.c.l.b16 %v162
  %v459 = vunpack.c.l.b16 %v163
  %v460 = vunpack.c.l.b16 %v164
  %v461 = vunpack.c.l.b16 %v165
  %v462 = vunpack.c.l.b16 %v166
  %v463 = vpack.c.b16 %v336, %v335
  %v464 = vpack.c.b16 %v338, %v337
  %v465 = vpack.c.b16 %v340, %v339
  %v466 = vpack.c.b16 %v342, %v341
  %v467 = vpack.c.b16 %v344, %v343
  %v468 = vpack.c.b16 %v346, %v345
  %v469 = vpack.c.b16 %v348, %v347
  %v470 = vpack.c.b16 %v350, %v349
  %v471 = vpack.c.b16 %v352, %v351
  %v472 = vpack.c.b16 %v354, %v353
  %v473 = vpack.c.b16 %v356, %v355
  %v474 = vpack.c.b16 %v358, %v357
  %v475 = vpack.c.b16 %v360, %v359
  %v476 = vpack.c.b16 %v362, %v361
  %v477 = vpack.c.b16 %v364, %v363
  %v478 = vpack.c.b16 %v366, %v365
  %v479 = vpack.c.b16 %v368, %v367
  %v480 = vpack.c.b16 %v370, %v369
  %v481 = vpack.c.b16 %v372, %v371
  %v482 = vpack.c.b16 %v374, %v373
  %v483 = vpack.c.b16 %v376, %v375
  %v484 = vpack.c.b16 %v378, %v377
  %v485 = vpack.c.b16 %v380, %v379
  %v486 = vpack.c.b16 %v382, %v381
  %v487 = vpack.c.b16 %v384, %v383
  %v488 = vpack.c.b16 %v386, %v385
  %v489 = vpack.c.b16 %v388, %v387
  %v490 = vpack.c.b16 %v390, %v389
  %v491 = vpack.c.b16 %v392, %v391
  %v492 = vpack.c.b16 %v394, %v393
  %v493 = vpack.c.b16 %v396, %v395
  %v494 = vpack.c.b16 %v398, %v397
  %v495 = vpack.c.b16 %v400, %v399
  %v496 = vpack.c.b16 %v402, %v401
  %v497 = vpack.c.b16 %v404, %v403
  %v498 = vpack.c.b16 %v406, %v405
  %v499 = vpack.c.b16 %v408, %v407
  %v500 = vpack.c.b16 %v410, %v409
  %v501 = vpack.c.b16 %v412, %v411
  %v502 = vpack.c.b16 %v414, %v413
  %v503 = vpack.c.b16 %v416, %v415
  %v504 = vpack.c.b16 %v418, %v417
  %v505 = vpack.c.b16 %v420, %v419
  %v506 = vpack.c.b16 %v422, %v421
  %v507 = vpack.c.b16 %v424, %v423
  %v508 = vpack.c.b16 %v426, %v425
  %v509 = vpack.c.b16 %v428, %v427
  %v510 = vpack.c.b16 %v430, %v429
  %v511 = vpack.c.b16 %v432, %v431
  %v512 = vpack.c.b16 %v434, %v433
  %v513 = vpack.c.b16 %v436, %v435
  %v514 = vpack.c.b16 %v438, %v437
  %v515 = vpack.c.b16 %v440, %v439
  %v516 = vpack.c.b16 %v442, %v441
  %v517 = vpack.c.b16 %v444, %v443
  %v518 = vpack.c.b16 %v446, %v445
  %v519 = vpack.c.b16 %v448, %v447
  %v520 = vpack.c.b16 %v450, %v449
  %v521 = vpack.c.b16 %v452, %v451
  %v522 = vpack.c.b16 %v454, %v453
  %v523 = vpack.c.b16 %v456, %v455
  %v524 = vpack.c.b16 %v458, %v457
  %v525 = vpack.c.b16 %v460, %v459
  %v526 = vpack.c.b16 %v462, %v461
  %591 = vmatpush.bf16.msra.mxu0 %v470
  %592 = vmatpush.bf16.msra.mxu0 %v469
  %593 = vmatpush.bf16.msra.mxu0 %v468
  %594 = vmatpush.bf16.msra.mxu0 %v467
  %595 = vmatpush.bf16.msra.mxu0 %v466
  %596 = vmatpush.bf16.msra.mxu0 %v465
  %597 = vmatpush.bf16.msra.mxu0 %v464
  %598 = vmatpush.bf16.msra.mxu0 %v463
  %599 = vmatmul.bf16.gmra.mxu0 %v191
  %v600 = vpop.f32.mrf.mxu0
  %v601 = vadd.f32 0.0, %v600
  %v602 = vpop.f32.mrf.mxu0
  %v603 = vadd.f32 0.0, %v602
  %604 = vdwg.mxu0
  %605 = vmatpush.bf16.msra.mxu0 %v478
  %606 = vmatpush.bf16.msra.mxu0 %v477
  %607 = vmatpush.bf16.msra.mxu0 %v476
  %608 = vmatpush.bf16.msra.mxu0 %v475
  %609 = vmatpush.bf16.msra.mxu0 %v474
  %610 = vmatpush.bf16.msra.mxu0 %v473
  %611 = vmatpush.bf16.msra.mxu0 %v472
  %612 = vmatpush.bf16.msra.mxu0 %v471
  %613 = vmatmul.bf16.gmra.mxu0 %v192
  %v614 = vpop.f32.mrf.mxu0
  %v615 = vadd.f32 %v601, %v614
  %v616 = vpop.f32.mrf.mxu0
  %v617 = vadd.f32 %v603, %v616
  %618 = vdwg.mxu0
  %619 = vmatpush.bf16.msra.mxu0 %v486
  %620 = vmatpush.bf16.msra.mxu0 %v485
  %621 = vmatpush.bf16.msra.mxu0 %v484
  %622 = vmatpush.bf16.msra.mxu0 %v483
  %623 = vmatpush.bf16.msra.mxu0 %v482
  %624 = vmatpush.bf16.msra.mxu0 %v481
  %625 = vmatpush.bf16.msra.mxu0 %v480
  %626 = vmatpush.bf16.msra.mxu0 %v479
  %627 = vmatmul.bf16.gmra.mxu0 %v193
  %v628 = vpop.f32.mrf.mxu0
  %v629 = vadd.f32 %v615, %v628
  %v630 = vpop.f32.mrf.mxu0
  %v631 = vadd.f32 %v617, %v630
  %632 = vdwg.mxu0
  %633 = vmatpush.bf16.msra.mxu0 %v494
  %634 = vmatpush.bf16.msra.mxu0 %v493
  %635 = vmatpush.bf16.msra.mxu0 %v492
  %636 = vmatpush.bf16.msra.mxu0 %v491
  %637 = vmatpush.bf16.msra.mxu0 %v490
  %638 = vmatpush.bf16.msra.mxu0 %v489
  %639 = vmatpush.bf16.msra.mxu0 %v488
  %640 = vmatpush.bf16.msra.mxu0 %v487
  %641 = vmatmul.bf16.gmra.mxu0 %v194
  %v642 = vpop.f32.mrf.mxu0
  %v643 = vadd.f32 %v629, %v642
  %v644 = vpop.f32.mrf.mxu0
  %v645 = vadd.f32 %v631, %v644
  %646 = vdwg.mxu0
  %647 = vmatpush.bf16.msra.mxu0 %v502
  %648 = vmatpush.bf16.msra.mxu0 %v501
  %649 = vmatpush.bf16.msra.mxu0 %v500
  %650 = vmatpush.bf16.msra.mxu0 %v499
  %651 = vmatpush.bf16.msra.mxu0 %v498
  %652 = vmatpush.bf16.msra.mxu0 %v497
  %653 = vmatpush.bf16.msra.mxu0 %v496
  %654 = vmatpush.bf16.msra.mxu0 %v495
  %655 = vmatmul.bf16.gmra.mxu0 %v195
  %v656 = vpop.f32.mrf.mxu0
  %v657 = vadd.f32 %v643, %v656
  %v658 = vpop.f32.mrf.mxu0
  %v659 = vadd.f32 %v645, %v658
  %660 = vdwg.mxu0
  %661 = vmatpush.bf16.msra.mxu0 %v510
  %662 = vmatpush.bf16.msra.mxu0 %v509
  %663 = vmatpush.bf16.msra.mxu0 %v508
  %664 = vmatpush.bf16.msra.mxu0 %v507
  %665 = vmatpush.bf16.msra.mxu0 %v506
  %666 = vmatpush.bf16.msra.mxu0 %v505
  %667 = vmatpush.bf16.msra.mxu0 %v504
  %668 = vmatpush.bf16.msra.mxu0 %v503
  %669 = vmatmul.bf16.gmra.mxu0 %v196
  %v670 = vpop.f32.mrf.mxu0
  %v671 = vadd.f32 %v657, %v670
  %v672 = vpop.f32.mrf.mxu0
  %v673 = vadd.f32 %v659, %v672
  %674 = vdwg.mxu0
  %675 = vmatpush.bf16.msra.mxu0 %v518
  %676 = vmatpush.bf16.msra.mxu0 %v517
  %677 = vmatpush.bf16.msra.mxu0 %v516
  %678 = vmatpush.bf16.msra.mxu0 %v515
  %679 = vmatpush.bf16.msra.mxu0 %v514
  %680 = vmatpush.bf16.msra.mxu0 %v513
  %681 = vmatpush.bf16.msra.mxu0 %v512
  %682 = vmatpush.bf16.msra.mxu0 %v511
  %683 = vmatmul.bf16.gmra.mxu0 %v197
  %v684 = vpop.f32.mrf.mxu0
  %v685 = vadd.f32 %v671, %v684
  %v686 = vpop.f32.mrf.mxu0
  %v687 = vadd.f32 %v673, %v686
  %688 = vdwg.mxu0
  %689 = vmatpush.bf16.msra.mxu0 %v526
  %690 = vmatpush.bf16.msra.mxu0 %v525
  %691 = vmatpush.bf16.msra.mxu0 %v524
  %692 = vmatpush.bf16.msra.mxu0 %v523
  %693 = vmatpush.bf16.msra.mxu0 %v522
  %694 = vmatpush.bf16.msra.mxu0 %v521
  %695 = vmatpush.bf16.msra.mxu0 %v520
  %696 = vmatpush.bf16.msra.mxu0 %v519
  %697 = vmatmul.bf16.gmra.mxu0 %v198
  %v698 = vpop.f32.mrf.mxu0
  %v699 = vadd.f32 %v685, %v698
  %v700 = vpop.f32.mrf.mxu0
  %v701 = vadd.f32 %v687, %v700
  %702 = vdwg.mxu0
  %v703 = vadd.f32 %v29, %v699
  %v704 = vadd.f32 %v30, %v701
  %705 = vst [vmem:[#allocation2] sm:$0xff] %v703
  %706 = vst [vmem:[#allocation2 + $0x8] sm:$0xff] %v704
  // Predicated region
  $region30: #{fcnn_perception_forward.1} parent=0 // pred_check
    %p707 = pneg %p23
  $region31: #{fcnn_perception_forward.1} parent=0 // pred_check_branch
    %709 = sbr.rel (%p707) target = $region33
  $region32: #{fcnn_perception_forward.1} parent=0 // pred_region
    %v710 = vld [vmem:[#allocation2] sm:$0xff]
    %v711 = vld [vmem:[#allocation2 + $0x8] sm:$0xff]
    %v712 = vld [vmem:[%s2] sm:$0x1]
    %v714 = vperm.slane %v712, 0
    %v716 = vadd.f32 %v710, %v714
    %v717 = vadd.f32 %v711, %v714
    %v718 = vld [vmem:[%s5] sm:$0xff]
    %v719 = vld [vmem:[%s5 + $0x8] sm:$0xff]
    %v720 = vld [vmem:[%s5 + $0x10] sm:$0xff]
    %v721 = vld [vmem:[%s5 + $0x18] sm:$0xff]
    %v722 = vld [vmem:[%s5 + $0x20] sm:$0xff]
    %v723 = vld [vmem:[%s5 + $0x28] sm:$0xff]
    %v724 = vld [vmem:[%s5 + $0x30] sm:$0xff]
    %v725 = vld [vmem:[%s5 + $0x38] sm:$0xff]
    %v726 = vld [vmem:[%s5 + $0x40] sm:$0xff]
    %v727 = vld [vmem:[%s5 + $0x48] sm:$0xff]
    %v728 = vld [vmem:[%s5 + $0x50] sm:$0xff]
    %v729 = vld [vmem:[%s5 + $0x58] sm:$0xff]
    %v730 = vld [vmem:[%s5 + $0x60] sm:$0xff]
    %v731 = vld [vmem:[%s5 + $0x68] sm:$0xff]
    %v732 = vld [vmem:[%s5 + $0x70] sm:$0xff]
    %v733 = vld [vmem:[%s5 + $0x78] sm:$0xff]
    %v734 = vld [vmem:[%s5 + $0x80] sm:$0xff]
    %v735 = vld [vmem:[%s5 + $0x88] sm:$0xff]
    %v736 = vld [vmem:[%s5 + $0x90] sm:$0xff]
    %v737 = vld [vmem:[%s5 + $0x98] sm:$0xff]
    %v738 = vld [vmem:[%s5 + $0xa0] sm:$0xff]
    %v739 = vld [vmem:[%s5 + $0xa8] sm:$0xff]
    %v740 = vld [vmem:[%s5 + $0xb0] sm:$0xff]
    %v741 = vld [vmem:[%s5 + $0xb8] sm:$0xff]
    %v742 = vld [vmem:[%s5 + $0xc0] sm:$0xff]
    %v743 = vld [vmem:[%s5 + $0xc8] sm:$0xff]
    %v744 = vld [vmem:[%s5 + $0xd0] sm:$0xff]
    %v745 = vld [vmem:[%s5 + $0xd8] sm:$0xff]
    %v746 = vld [vmem:[%s5 + $0xe0] sm:$0xff]
    %v747 = vld [vmem:[%s5 + $0xe8] sm:$0xff]
    %v748 = vld [vmem:[%s5 + $0xf0] sm:$0xff]
    %v749 = vld [vmem:[%s5 + $0xf8] sm:$0xff]
    %750 = vmatpush.msra.mxu0 %v748
    %751 = vmatpush.msra.mxu0 %v746
    %752 = vmatpush.msra.mxu0 %v744
    %753 = vmatpush.msra.mxu0 %v742
    %754 = vmatpush.msra.mxu0 %v740
    %755 = vmatpush.msra.mxu0 %v738
    %756 = vmatpush.msra.mxu0 %v736
    %757 = vmatpush.msra.mxu0 %v734
    %758 = vmatpush.msra.mxu0 %v732
    %759 = vmatpush.msra.mxu0 %v730
    %760 = vmatpush.msra.mxu0 %v728
    %761 = vmatpush.msra.mxu0 %v726
    %762 = vmatpush.msra.mxu0 %v724
    %763 = vmatpush.msra.mxu0 %v722
    %764 = vmatpush.msra.mxu0 %v720
    %765 = vmatpush.msra.mxu0 %v718
    %766 = vmatmul.f32.gmra.mxu0 %v716
    %v767 = vpop.f32.mrf.mxu0
    %v768 = vadd.f32 0.0, %v767
    %769 = vmatmul.f32.gmra.mxu0 %v717
    %v770 = vpop.f32.mrf.mxu0
    %v771 = vadd.f32 0.0, %v770
    %772 = vdwg.mxu0
    %773 = vmatpush.msra.mxu0 %v749
    %774 = vmatpush.msra.mxu0 %v747
    %775 = vmatpush.msra.mxu0 %v745
    %776 = vmatpush.msra.mxu0 %v743
    %777 = vmatpush.msra.mxu0 %v741
    %778 = vmatpush.msra.mxu0 %v739
    %779 = vmatpush.msra.mxu0 %v737
    %780 = vmatpush.msra.mxu0 %v735
    %781 = vmatpush.msra.mxu0 %v733
    %782 = vmatpush.msra.mxu0 %v731
    %783 = vmatpush.msra.mxu0 %v729
    %784 = vmatpush.msra.mxu0 %v727
    %785 = vmatpush.msra.mxu0 %v725
    %786 = vmatpush.msra.mxu0 %v723
    %787 = vmatpush.msra.mxu0 %v721
    %788 = vmatpush.msra.mxu0 %v719
    %789 = vmatmul.f32.gmra.mxu0 %v716
    %v790 = vpop.f32.mrf.mxu0
    %v791 = vadd.f32 0.0, %v790
    %792 = vmatmul.f32.gmra.mxu0 %v717
    %v793 = vpop.f32.mrf.mxu0
    %v794 = vadd.f32 0.0, %v793
    %795 = vdwg.mxu0
    %v796 = vxor.u32 %v716, 2147483648
    %v797 = vxor.u32 %v717, 2147483648
    %v798 = vmul.f32 %v796, 1.442695
    %v799 = vpow.pop %v798
    %v800 = vmul.f32 %v797, 1.442695
    %v801 = vpow.pop %v800
    %v802 = vadd.f32 %v799, 1.0
    %v803 = vadd.f32 %v801, 1.0
    %v804 = vrcp.pop %v802
    %v805 = vmul.f32 %v802, %v804
    %v806 = vsub.f32 1.0, %v805
    %v807 = vmul.f32 %v804, %v806
    %v808 = vadd.f32 %v804, %v807
    %vm809 = vweird.f32 %v802
    %vm810 = vweird.f32 %v804
    %vm811 = vmor %vm809, %vm810
    %v812 = vsel %vm811, %v804, %v808
    %v813 = vand.u32 2147483647, %v802
    %vm814 = vcmp.eq.f32.partialorder %v813, 8.507059e+37
    %v815 = vand.u32 %v802, 2147483648
    %v816 = vor.u32 1.1754944e-38, %v815
    %v817 = vsel %vm814, %v816, %v812
    %v818 = vmul.f32 1.0, %v817
    %v819 = vrcp.pop %v803
    %v820 = vmul.f32 %v803, %v819
    %v821 = vsub.f32 1.0, %v820
    %v822 = vmul.f32 %v819, %v821
    %v823 = vadd.f32 %v819, %v822
    %vm824 = vweird.f32 %v803
    %vm825 = vweird.f32 %v819
    %vm826 = vmor %vm824, %vm825
    %v827 = vsel %vm826, %v819, %v823
    %v828 = vand.u32 2147483647, %v803
    %vm829 = vcmp.eq.f32.partialorder %v828, 8.507059e+37
    %v830 = vand.u32 %v803, 2147483648
    %v831 = vor.u32 1.1754944e-38, %v830
    %v832 = vsel %vm829, %v831, %v827
    %v833 = vmul.f32 1.0, %v832
    %v834 = vld [vmem:[%s3] sm:$0xff]
    %v835 = vld [vmem:[%s3 + $0x8] sm:$0xff]
    %v836 = vld [vmem:[%s3 + $0x10] sm:$0xff]
    %v837 = vld [vmem:[%s3 + $0x18] sm:$0xff]
    %v838 = vld [vmem:[%s3 + $0x20] sm:$0xff]
    %v839 = vld [vmem:[%s3 + $0x28] sm:$0xff]
    %v840 = vld [vmem:[%s3 + $0x30] sm:$0xff]
    %v841 = vld [vmem:[%s3 + $0x38] sm:$0xff]
    %v842 = vld [vmem:[%s3 + $0x40] sm:$0xff]
    %v843 = vld [vmem:[%s3 + $0x48] sm:$0xff]
    %v844 = vld [vmem:[%s3 + $0x50] sm:$0xff]
    %v845 = vld [vmem:[%s3 + $0x58] sm:$0xff]
    %v846 = vld [vmem:[%s3 + $0x60] sm:$0xff]
    %v847 = vld [vmem:[%s3 + $0x68] sm:$0xff]
    %v848 = vld [vmem:[%s3 + $0x70] sm:$0xff]
    %v849 = vld [vmem:[%s3 + $0x78] sm:$0xff]
    %v850 = vld [vmem:[%s3 + $0x80] sm:$0xff]
    %v851 = vld [vmem:[%s3 + $0x88] sm:$0xff]
    %v852 = vld [vmem:[%s3 + $0x90] sm:$0xff]
    %v853 = vld [vmem:[%s3 + $0x98] sm:$0xff]
    %v854 = vld [vmem:[%s3 + $0xa0] sm:$0xff]
    %v855 = vld [vmem:[%s3 + $0xa8] sm:$0xff]
    %v856 = vld [vmem:[%s3 + $0xb0] sm:$0xff]
    %v857 = vld [vmem:[%s3 + $0xb8] sm:$0xff]
    %v858 = vld [vmem:[%s3 + $0xc0] sm:$0xff]
    %v859 = vld [vmem:[%s3 + $0xc8] sm:$0xff]
    %v860 = vld [vmem:[%s3 + $0xd0] sm:$0xff]
    %v861 = vld [vmem:[%s3 + $0xd8] sm:$0xff]
    %v862 = vld [vmem:[%s3 + $0xe0] sm:$0xff]
    %v863 = vld [vmem:[%s3 + $0xe8] sm:$0xff]
    %v864 = vld [vmem:[%s3 + $0xf0] sm:$0xff]
    %v865 = vld [vmem:[%s3 + $0xf8] sm:$0xff]
    %v866 = vld [vmem:[%s4] sm:$0x3]
    %v868 = vperm.slane %v866, 0
    %v869 = vperm.slane %v866, 1
    %872 = vmatpush.msra.mxu0 %v864
    %873 = vmatpush.msra.mxu0 %v862
    %874 = vmatpush.msra.mxu0 %v860
    %875 = vmatpush.msra.mxu0 %v858
    %876 = vmatpush.msra.mxu0 %v856
    %877 = vmatpush.msra.mxu0 %v854
    %878 = vmatpush.msra.mxu0 %v852
    %879 = vmatpush.msra.mxu0 %v850
    %880 = vmatpush.msra.mxu0 %v848
    %881 = vmatpush.msra.mxu0 %v846
    %882 = vmatpush.msra.mxu0 %v844
    %883 = vmatpush.msra.mxu0 %v842
    %884 = vmatpush.msra.mxu0 %v840
    %885 = vmatpush.msra.mxu0 %v838
    %886 = vmatpush.msra.mxu0 %v836
    %887 = vmatpush.msra.mxu0 %v834
    %888 = vmatmul.f32.gmra.mxu0 %v818
    %v889 = vpop.f32.mrf.mxu0
    %v890 = vadd.f32 %v868, %v889
    %891 = vmatmul.f32.gmra.mxu0 %v833
    %v892 = vpop.f32.mrf.mxu0
    %v893 = vadd.f32 %v868, %v892
    %894 = vdwg.mxu0
    %895 = vmatpush.msra.mxu0 %v865
    %896 = vmatpush.msra.mxu0 %v863
    %897 = vmatpush.msra.mxu0 %v861
    %898 = vmatpush.msra.mxu0 %v859
    %899 = vmatpush.msra.mxu0 %v857
    %900 = vmatpush.msra.mxu0 %v855
    %901 = vmatpush.msra.mxu0 %v853
    %902 = vmatpush.msra.mxu0 %v851
    %903 = vmatpush.msra.mxu0 %v849
    %904 = vmatpush.msra.mxu0 %v847
    %905 = vmatpush.msra.mxu0 %v845
    %906 = vmatpush.msra.mxu0 %v843
    %907 = vmatpush.msra.mxu0 %v841
    %908 = vmatpush.msra.mxu0 %v839
    %909 = vmatpush.msra.mxu0 %v837
    %910 = vmatpush.msra.mxu0 %v835
    %911 = vmatmul.f32.gmra.mxu0 %v818
    %v912 = vpop.f32.mrf.mxu0
    %v913 = vadd.f32 %v869, %v912
    %914 = vmatmul.f32.gmra.mxu0 %v833
    %v915 = vpop.f32.mrf.mxu0
    %v916 = vadd.f32 %v869, %v915
    %917 = vdwg.mxu0
    %vm918 = vcmp.gt.f32.partialorder %v768, 0.0
    %vm919 = vcmp.gt.f32.partialorder %v791, 0.0
    %vm920 = vcmp.gt.f32.partialorder %v771, 0.0
    %vm921 = vcmp.gt.f32.partialorder %v794, 0.0
    %v922 = vsel %vm918, %v890, 0.0
    %v923 = vsel %vm919, %v913, 0.0
    %v924 = vsel %vm920, %v893, 0.0
    %v925 = vsel %vm921, %v916, 0.0
    %926 = vst [vmem:[%s6] sm:$0xff] %v922
    %927 = vst [vmem:[%s6 + $0x8] sm:$0xff] %v923
    %928 = vst [vmem:[%s6 + $0x10] sm:$0xff] %v924
    %929 = vst [vmem:[%s6 + $0x18] sm:$0xff] %v925
  $region33: #{fcnn_perception_forward.1} parent=0 // pred_fallthru
    _
  // Predicated region
  $region34: #{fcnn_perception_forward.1} parent=0 // pred_check
    _
  $region35: #{fcnn_perception_forward.1} parent=0 // pred_check_branch
    %931 = sbr.rel (0) target = $region37
  $region36: #{fcnn_perception_forward.1} parent=0 // pred_region
    _
  $region37: #{fcnn_perception_forward.1} parent=0 // pred_fallthru
    _
  // Predicated region
  $region38: #{fcnn_perception_forward.1} parent=0 // pred_check
    _
  $region39: #{fcnn_perception_forward.1} parent=0 // pred_check_branch
    %933 = sbr.rel (0) target = $region41
  $region40: #{fcnn_perception_forward.1} parent=0 // pred_region
    _
  $region41: #{fcnn_perception_forward.1} parent=0 // pred_fallthru
    _

</llo_original>
